<compile_context>
chip_gen: v7x
topology: tpu7x:2x2x1
jax: 0.10.0
libtpu: 0.0.40
codegen_flags: <defaults>
</compile_context>

<pallas_src>
import functools

import jax
import jax.numpy as jnp
from jax.experimental import pallas as pl
from jax.experimental.pallas import tpu as pltpu

ALPHA = 0.1     # APPNP teleport probability
K_HOPS = 10     # APPNP iterations
C_PAD = 128     # lane-padded class dimension
NEG = -1e30     # finite "-inf" for masking


def _round_up(v, m):
    return ((v + m - 1) // m) * m


def _vmem_capacity_bytes():
    try:
        return int(pltpu.get_tpu_info().vmem_capacity_bytes)
    except Exception:
        return 64 * 1024 * 1024  # conservative (v7x-sized) fallback


def _vmem_needed_bytes(tm, n_pad, f, h_dim, adj_resident):
    """Rough per-buffer VMEM accounting (assumes 2x buffering everywhere)."""
    weights = 2 * (f * h_dim * 2 + h_dim * 4 + h_dim * C_PAD * 2 + C_PAD * 4)
    x_buf = 2 * tm * f * 2                          # bf16 x row tiles
    out_buf = 2 * 3 * tm * C_PAD * 4                # 3 f32 row-tiled outputs
    scratch = 3 * n_pad * C_PAD * 2 + 2 * 8 * C_PAD * 4  # bf16 z/zp/ah + m/l
    if adj_resident:
        adj_buf = 2 * n_pad * n_pad * 2
    else:
        adj_buf = 2 * tm * n_pad * 2
    return weights + x_buf + out_buf + scratch + adj_buf


def _app_kernel(x_ref, w1t_ref, b1_ref, w2t_ref, b2_ref, adj_ref,
                logsm_ref, z_out_ref, sm0_ref,
                za_scr, zb_scr, ah_scr, m_scr, l_scr,
                *, num_nodes, num_classes, row_tile, adj_resident):
    k = pl.program_id(0)          # 0 = MLP, 1..K = hops, K+1 = softmax(dim=0)
    r = pl.program_id(1)          # row tile
    row_start = pl.multiple_of(r * row_tile, row_tile)
    rows = pl.ds(row_start, row_tile)

    # ---- init online column (dim=0) max / sum accumulators ------------------
    @pl.when(jnp.logical_and(k == 0, r == 0))
    def _init_col_acc():
        m_scr[...] = jnp.full(m_scr.shape, NEG, jnp.float32)
        l_scr[...] = jnp.zeros(l_scr.shape, jnp.float32)

    # ---- k == 0 : MLP for this row tile, init z (ping) and alpha*h ----------
    @pl.when(k == 0)
    def _mlp():
        h1 = jnp.dot(x_ref[...], w1t_ref[...],          # x streamed as bf16
                     preferred_element_type=jnp.float32)
        h1 = jnp.maximum(h1 + b1_ref[...], 0.0).astype(jnp.bfloat16)
        h = jnp.dot(h1, w2t_ref[...], preferred_element_type=jnp.float32)
        h = h + b2_ref[...]                              # (row_tile, C_PAD) f32
        za_scr[rows, :] = h.astype(jnp.bfloat16)         # z^(0) = h
        ah_scr[rows, :] = (jnp.float32(ALPHA) * h).astype(jnp.bfloat16)

    # ---- k in 1..K : one APPNP hop for this row tile (parity ping-pong) -----
    def _hop(src, dst, can_finalize):
        if adj_resident:
            adj_tile = adj_ref[rows, :]                  # slice resident adj
        else:
            adj_tile = adj_ref[...]                      # streamed row tile
        z_new = jnp.dot(adj_tile, src[...],              # adj pre-scaled by (1-alpha)
                        preferred_element_type=jnp.float32)
        z_new = z_new + ah_scr[rows, :].astype(jnp.float32)
        z_q = z_new.astype(jnp.bfloat16)
        dst[rows, :] = z_q

        if not can_finalize:                             # static: parity mismatch
            return

        @pl.when(k == K_HOPS)
        def _emit_final_tile():
            # f32 z and log_softmax(dim=1) are row-independent -> write per tile.
            z_out_ref[...] = z_new

            col = jax.lax.broadcasted_iota(jnp.int32, z_new.shape, 1)
            cmask = col < num_classes                    # real class lanes
            zc = jnp.where(cmask, z_new, NEG)
            m1 = jnp.max(zc, axis=1, keepdims=True)
            sh = zc - m1
            e1 = jnp.where(cmask, jnp.exp(sh), 0.0)
            logsm_ref[...] = sh - jnp.log(jnp.sum(e1, axis=1, keepdims=True))

            # Online column (dim=0) max / sum using the same bf16-quantized z
            # that the normalize pass will read (keeps column sums == 1).
            row_ids = jax.lax.broadcasted_iota(jnp.int32, z_new.shape, 0) + row_start
            rmask = row_ids < num_nodes                  # real node rows
            zq32 = jnp.where(rmask, z_q.astype(jnp.float32), NEG)
            t_max = jnp.max(zq32, axis=0, keepdims=True)
            m_old = m_scr[...]
            m_new = jnp.maximum(m_old, t_max)
            e0 = jnp.where(rmask, jnp.exp(zq32 - m_new), 0.0)
            l_scr[...] = l_scr[...] * jnp.exp(m_old - m_new) + \
                jnp.sum(e0, axis=0, keepdims=True)
            m_scr[...] = m_new

    is_hop = jnp.logical_and(k >= 1, k <= K_HOPS)

    @pl.when(jnp.logical_and(is_hop, (k % 2) == 1))
    def _odd():
        _hop(za_scr, zb_scr, can_finalize=(K_HOPS % 2 == 1))

    @pl.when(jnp.logical_and(is_hop, (k % 2) == 0))
    def _even():
        _hop(zb_scr, za_scr, can_finalize=(K_HOPS % 2 == 0))

    # ---- k == K+1 : softmax(dim=0) normalization pass (per row tile) --------
    @pl.when(k == K_HOPS + 1)
    def _normalize():
        final_scr = za_scr if (K_HOPS % 2 == 0) else zb_scr
        z_b = final_scr[rows, :].astype(jnp.float32)
        row_ids = jax.lax.broadcasted_iota(jnp.int32, z_b.shape, 0) + row_start
        rmask = row_ids < num_nodes
        e0 = jnp.where(rmask, jnp.exp(z_b - m_scr[...]), 0.0)
        sm0_ref[...] = e0 * pl.reciprocal(l_scr[...], approx=True)


@functools.partial(jax.jit, static_argnames=("row_tile", "adj_resident"))
def app_forward(x, w1, b1, w2, b2, adj_norm, row_tile=512, adj_resident=None):
    n, f = x.shape
    h_dim = w1.shape[0]
    c = w2.shape[0]
    assert c <= C_PAD

    tm = _round_up(min(row_tile, _round_up(n, 8)), 8)
    n_pad = _round_up(n, tm)
    nr = n_pad // tm
    last = nr - 1
    K = K_HOPS

    # VMEM budget (generation-aware cap) and resident-adjacency decision.
    vmem_cap = _vmem_capacity_bytes()
    cap = vmem_cap - ((8 << 20) if vmem_cap <= (64 << 20) else (28 << 20))
    if adj_resident is None:
        adj_resident = _vmem_needed_bytes(tm, n_pad, f, h_dim, True) + (4 << 20) <= cap
    needed = _vmem_needed_bytes(tm, n_pad, f, h_dim, adj_resident)
    vmem_limit = int(min(cap, max(2 * needed, 16 << 20)))

    # Pad node dim; x streamed as bf16 (MXU operand dtype), fold (1 - alpha)
    # into adjacency; bf16 adjacency stream.
    x_p = jnp.zeros((n_pad, f), jnp.float32).at[:n, :].set(
        x.astype(jnp.float32)).astype(jnp.bfloat16)
    adj_p = jnp.zeros((n_pad, n_pad), jnp.float32).at[:n, :n].set(adj_norm)
    adj_scaled = ((1.0 - ALPHA) * adj_p).astype(jnp.bfloat16)
    # TODO(synk): int8 (v5e/v6e) / fp8 (v7x) adjacency quantization fast path.

    # Pre-transposed (and class-lane-padded) weights; bf16 MXU operands.
    w1t = w1.T.astype(jnp.bfloat16)                                      # (F, H)
    b1r = b1.reshape(1, h_dim).astype(jnp.float32)
    w2t = jnp.zeros((h_dim, C_PAD), jnp.float32).at[:, :c].set(w2.T)     # (H, C_PAD)
    w2t = w2t.astype(jnp.bfloat16)
    b2r = jnp.zeros((1, C_PAD), jnp.float32).at[:, :c].set(b2.reshape(1, c))

    kernel = functools.partial(_app_kernel, num_nodes=n, num_classes=c,
                               row_tile=tm, adj_resident=bool(adj_resident))

    # ---- clamped index maps: no wasted HBM re-streaming ----------------------
    def x_idx(k, r):                       # x only needed at k == 0
        return (jnp.where(k == 0, r, last), 0)

    if adj_resident:
        adj_spec = pl.BlockSpec((n_pad, n_pad), lambda k, r: (0, 0))      # DMA'd once
    else:
        def adj_idx(k, r):                 # adj only needed at k in 1..K
            return (jnp.where(k == 0, 0, jnp.where(k <= K, r, last)), 0)
        adj_spec = pl.BlockSpec((tm, n_pad), adj_idx)

    def final_idx(k, r):                   # z / log_softmax tiles written at k == K
        return (jnp.where(k < K, 0, jnp.where(k == K, r, last)), 0)

    def sm0_idx(k, r):                     # softmax(dim=0) tiles written at k == K+1
        return (jnp.where(k <= K, 0, r), 0)

    out_shape = tuple(jax.ShapeDtypeStruct((n_pad, C_PAD), jnp.float32)
                      for _ in range(3))

    logsm_p, z_p, sm0_p = pl.pallas_call(
        kernel,
        out_shape=out_shape,
        grid_spec=pltpu.PrefetchScalarGridSpec(
            num_scalar_prefetch=0,
            grid=(K + 2, nr),
            in_specs=[
                pl.BlockSpec((tm, f), x_idx),                        # x row tile (bf16)
                pl.BlockSpec((f, h_dim), lambda k, r: (0, 0)),       # W1^T (resident)
                pl.BlockSpec((1, h_dim), lambda k, r: (0, 0)),       # b1
                pl.BlockSpec((h_dim, C_PAD), lambda k, r: (0, 0)),   # W2^T (padded)
                pl.BlockSpec((1, C_PAD), lambda k, r: (0, 0)),       # b2 (padded)
                adj_spec,                                            # adjacency (bf16)
            ],
            out_specs=(
                pl.BlockSpec((tm, C_PAD), final_idx),  # log_softmax(dim=1) row tile
                pl.BlockSpec((tm, C_PAD), final_idx),  # z row tile
                pl.BlockSpec((tm, C_PAD), sm0_idx),    # softmax(dim=0) row tile
            ),
            scratch_shapes=[
                pltpu.VMEM((n_pad, C_PAD), jnp.bfloat16),   # z ping
                pltpu.VMEM((n_pad, C_PAD), jnp.bfloat16),   # z pong
                pltpu.VMEM((n_pad, C_PAD), jnp.bfloat16),   # alpha * h
                pltpu.VMEM((1, C_PAD), jnp.float32),        # online column max
                pltpu.VMEM((1, C_PAD), jnp.float32),        # online column sum
            ],
        ),
        compiler_params=pltpu.CompilerParams(
            # z ping-pong / column-accumulator carries live in per-core scratch
            # -> both axes sequential.
            dimension_semantics=("arbitrary", "arbitrary"),
            vmem_limit_bytes=vmem_limit,
        ),
    )(x_p, w1t, b1r, w2t, b2r, adj_scaled)

    return logsm_p[:n, :c], z_p[:n, :c], sm0_p[:n, :c]


def build_gcn_norm_adj(edge_index, num_nodes):
    """Dense D^-1/2 (A + I) D^-1/2, matching APPNP's gcn_norm (plain-JAX glue)."""
    src, dst = edge_index[0], edge_index[1]
    adj = jnp.zeros((num_nodes, num_nodes), jnp.float32)
    adj = adj.at[src, dst].add(1.0)                     # scatter-add duplicates
    adj = adj + jnp.eye(num_nodes, dtype=jnp.float32)   # add self loops
    deg = jnp.sum(adj, axis=1)
    dinv = jnp.where(deg > 0, 1.0 / jnp.sqrt(deg), 0.0)
    return dinv[:, None] * adj * dinv[None, :]


def ref_forward(x, w1, b1, w2, b2, adj):
    """Pure-JAX f32 reference of the PyTorch forward (inference mode)."""
    h = jnp.maximum(x @ w1.T + b1, 0.0) @ w2.T + b2
    z = h
    for _ in range(K_HOPS):
        z = (1.0 - ALPHA) * (adj @ z) + ALPHA * h
    return jax.nn.log_softmax(z, axis=1), z, jax.nn.softmax(z, axis=0)


if __name__ == "__main__":
    # Small, deterministic problem: 8 nodes, 32 features, hidden 32, 4 classes.
    num_nodes, num_features, hidden, num_classes = 8, 32, 32, 4

    key = jax.random.PRNGKey(0)
    kx, k1, k2, k3, k4 = jax.random.split(key, 5)

    x = jax.random.normal(kx, (num_nodes, num_features), jnp.float32)

    # Deterministic PyTorch-Linear-style init (uniform +-1/sqrt(fan_in)).
    lim1 = 1.0 / jnp.sqrt(jnp.float32(num_features))
    w1 = jax.random.uniform(k1, (hidden, num_features), jnp.float32, -lim1, lim1)
    b1 = jax.random.uniform(k2, (hidden,), jnp.float32, -lim1, lim1)
    lim2 = 1.0 / jnp.sqrt(jnp.float32(hidden))
    w2 = jax.random.uniform(k3, (num_classes, hidden), jnp.float32, -lim2, lim2)
    b2 = jax.random.uniform(k4, (num_classes,), jnp.float32, -lim2, lim2)

    # Symmetric ring graph (both directions), shape (2, 16).
    fwd = jnp.stack([jnp.arange(num_nodes), (jnp.arange(num_nodes) + 1) % num_nodes])
    edge_index = jnp.concatenate([fwd, fwd[::-1]], axis=1).astype(jnp.int32)

    adj = build_gcn_norm_adj(edge_index, num_nodes)

    # Auto path (resident adjacency for this tiny graph).
    log_sm, logits, sm0 = app_forward(x, w1, b1, w2, b2, adj)
    jax.block_until_ready((log_sm, logits, sm0))

    # Also exercise the streaming-adjacency path.
    log_sm_s, logits_s, sm0_s = app_forward(x, w1, b1, w2, b2, adj,
                                            adj_resident=False)
    jax.block_until_ready((log_sm_s, logits_s, sm0_s))

    for arr in (log_sm, logits, sm0):
        assert arr.shape == (num_nodes, num_classes)

    # Internal consistency: softmaxes normalize along the right axes.
    assert float(jnp.max(jnp.abs(jnp.sum(jnp.exp(log_sm), axis=1) - 1.0))) < 1e-2
    assert float(jnp.max(jnp.abs(jnp.sum(sm0, axis=0) - 1.0))) < 1e-2

    # Resident vs streaming paths agree.
    assert float(jnp.max(jnp.abs(logits - logits_s))) < 1e-2
    assert float(jnp.max(jnp.abs(log_sm - log_sm_s))) < 1e-2
    assert float(jnp.max(jnp.abs(sm0 - sm0_s))) < 1e-2

    # Loose f32-reference check (kernel uses bf16 MXU operands, f32 accumulation).
    r_lsm, r_z, r_sm0 = ref_forward(x, w1, b1, w2, b2, adj)
    assert float(jnp.max(jnp.abs(logits - r_z))) < 1e-1
    assert float(jnp.max(jnp.abs(log_sm - r_lsm))) < 1e-1
    assert float(jnp.max(jnp.abs(sm0 - r_sm0))) < 5e-2

    print("KERNEL_OK")
</pallas_src>

<mosaic_0001>
module attributes {stable_mosaic.version = 11 : i64} {
  func.func @_app_kernel(%arg0: i32, %arg1: i32, %arg2: memref<8x32xbf16, #tpu.memory_space<vmem>>, %arg3: memref<32x32xbf16, #tpu.memory_space<vmem>>, %arg4: memref<1x32xf32, #tpu.memory_space<vmem>>, %arg5: memref<32x128xbf16, #tpu.memory_space<vmem>>, %arg6: memref<1x128xf32, #tpu.memory_space<vmem>>, %arg7: memref<8x8xbf16, #tpu.memory_space<vmem>>, %arg8: memref<8x128xf32, #tpu.memory_space<vmem>>, %arg9: memref<8x128xf32, #tpu.memory_space<vmem>>, %arg10: memref<8x128xf32, #tpu.memory_space<vmem>>, %arg11: memref<8x128xbf16, #tpu.memory_space<vmem>>, %arg12: memref<8x128xbf16, #tpu.memory_space<vmem>>, %arg13: memref<8x128xbf16, #tpu.memory_space<vmem>>, %arg14: memref<1x128xf32, #tpu.memory_space<vmem>>, %arg15: memref<1x128xf32, #tpu.memory_space<vmem>>) attributes {dimension_semantics = [#tpu.dimension_semantics<arbitrary>, #tpu.dimension_semantics<arbitrary>], iteration_bounds = array<i64: 12, 1>, scalar_prefetch = 0 : i64, scratch_operands = 5 : i64, tpu.core_type = #tpu.core_type<tc>, window_params = [{transform_indices = @transform_0, window_bounds = array<i64: 8, 32>}, {pipeline_mode = #tpu.pipeline_mode<synchronous>, transform_indices = @transform_1, window_bounds = array<i64: 32, 32>}, {pipeline_mode = #tpu.pipeline_mode<synchronous>, transform_indices = @transform_2, window_bounds = array<i64: 1, 32>}, {pipeline_mode = #tpu.pipeline_mode<synchronous>, transform_indices = @transform_3, window_bounds = array<i64: 32, 128>}, {pipeline_mode = #tpu.pipeline_mode<synchronous>, transform_indices = @transform_4, window_bounds = array<i64: 1, 128>}, {pipeline_mode = #tpu.pipeline_mode<synchronous>, transform_indices = @transform_5, window_bounds = array<i64: 8, 8>}, {transform_indices = @transform_6, window_bounds = array<i64: 8, 128>}, {transform_indices = @transform_7, window_bounds = array<i64: 8, 128>}, {transform_indices = @transform_8, window_bounds = array<i64: 8, 128>}]} {
    %c8_i32 = arith.constant 8 : i32
    %0 = arith.muli %arg1, %c8_i32 : i32
    %1 = tpu.assume_multiple %0, 8 : i32
    %c0_i32 = arith.constant 0 : i32
    %2 = arith.cmpi eq, %arg0, %c0_i32 : i32
    %c0_i32_0 = arith.constant 0 : i32
    %3 = arith.cmpi eq, %arg1, %c0_i32_0 : i32
    %4 = arith.andi %2, %3 : i1
    %5 = arith.extui %4 : i1 to i32
    %c0_i32_1 = arith.constant 0 : i32
    %6 = arith.cmpi ne, %5, %c0_i32_1 : i32
    scf.if %6 {
      %cst = arith.constant -1.000000e+30 : f32
      %44 = vector.broadcast %cst : f32 to vector<1x128xf32>
      %c0 = arith.constant 0 : index
      %c0_20 = arith.constant 0 : index
      %45 = vector.load %arg14[%c0, %c0_20] : memref<1x128xf32, #tpu.memory_space<vmem>>, vector<1x128xf32>
      tpu.vector_store %arg14[%c0, %c0_20], %44 {strides = array<i32>} : memref<1x128xf32, #tpu.memory_space<vmem>>, vector<1x128xf32>,
      %cst_21 = arith.constant 0.000000e+00 : f32
      %46 = vector.broadcast %cst_21 : f32 to vector<1x128xf32>
      %c0_22 = arith.constant 0 : index
      %c0_23 = arith.constant 0 : index
      %47 = vector.load %arg15[%c0_22, %c0_23] : memref<1x128xf32, #tpu.memory_space<vmem>>, vector<1x128xf32>
      tpu.vector_store %arg15[%c0_22, %c0_23], %46 {strides = array<i32>} : memref<1x128xf32, #tpu.memory_space<vmem>>, vector<1x128xf32>,
    } else {
    }
    %c0_i32_2 = arith.constant 0 : i32
    %7 = arith.cmpi eq, %arg0, %c0_i32_2 : i32
    %8 = arith.extui %7 : i1 to i32
    %c0_i32_3 = arith.constant 0 : i32
    %9 = arith.cmpi ne, %8, %c0_i32_3 : i32
    scf.if %9 {
      %c0 = arith.constant 0 : index
      %c0_20 = arith.constant 0 : index
      %44 = vector.load %arg2[%c0, %c0_20] : memref<8x32xbf16, #tpu.memory_space<vmem>>, vector<8x32xbf16>
      %c0_21 = arith.constant 0 : index
      %c0_22 = arith.constant 0 : index
      %45 = vector.load %arg3[%c0_21, %c0_22] : memref<32x32xbf16, #tpu.memory_space<vmem>>, vector<32x32xbf16>
      %cst = arith.constant dense<0.000000e+00> : vector<8x32xf32>
      %46 = tpu.matmul %44, %45, %cst {dimension_numbers = #tpu.dot_dimension_numbers<[1], [0], [0], [1], [0, 0, 1, 1], [], []>} : vector<8x32xbf16>, vector<32x32xbf16>, vector<8x32xf32> -> vector<8x32xf32>
      %c0_23 = arith.constant 0 : index
      %c0_24 = arith.constant 0 : index
      %47 = vector.load %arg4[%c0_23, %c0_24] : memref<1x32xf32, #tpu.memory_space<vmem>>, vector<1x32xf32>
      %48 = vector.broadcast %47 : vector<1x32xf32> to vector<8x32xf32>
      %49 = arith.addf %46, %48 : vector<8x32xf32>
      %cst_25 = arith.constant 0.000000e+00 : f32
      %50 = vector.broadcast %cst_25 : f32 to vector<8x32xf32>
      %51 = arith.maximumf %49, %50 : vector<8x32xf32>
      %52 = arith.truncf %51 : vector<8x32xf32> to vector<8x32xbf16>
      %c0_26 = arith.constant 0 : index
      %c0_27 = arith.constant 0 : index
      %53 = vector.load %arg5[%c0_26, %c0_27] : memref<32x128xbf16, #tpu.memory_space<vmem>>, vector<32x128xbf16>
      %cst_28 = arith.constant dense<0.000000e+00> : vector<8x128xf32>
      %54 = tpu.matmul %52, %53, %cst_28 {dimension_numbers = #tpu.dot_dimension_numbers<[1], [0], [0], [1], [0, 0, 1, 1], [], []>} : vector<8x32xbf16>, vector<32x128xbf16>, vector<8x128xf32> -> vector<8x128xf32>
      %c0_29 = arith.constant 0 : index
      %c0_30 = arith.constant 0 : index
      %55 = vector.load %arg6[%c0_29, %c0_30] : memref<1x128xf32, #tpu.memory_space<vmem>>, vector<1x128xf32>
      %56 = vector.broadcast %55 : vector<1x128xf32> to vector<8x128xf32>
      %57 = arith.addf %54, %56 : vector<8x128xf32>
      %58 = arith.truncf %57 : vector<8x128xf32> to vector<8x128xbf16>
      %59 = arith.index_cast %1 : i32 to index
      %c0_31 = arith.constant 0 : index
      %60 = vector.load %arg11[%59, %c0_31] : memref<8x128xbf16, #tpu.memory_space<vmem>>, vector<8x128xbf16>
      tpu.vector_store %arg11[%59, %c0_31], %58 {strides = array<i32>} : memref<8x128xbf16, #tpu.memory_space<vmem>>, vector<8x128xbf16>,
      %cst_32 = arith.constant 1.000000e-01 : f32
      %61 = vector.broadcast %cst_32 : f32 to vector<8x128xf32>
      %62 = arith.mulf %61, %57 : vector<8x128xf32>
      %63 = arith.truncf %62 : vector<8x128xf32> to vector<8x128xbf16>
      %64 = arith.index_cast %1 : i32 to index
      %c0_33 = arith.constant 0 : index
      %65 = vector.load %arg13[%64, %c0_33] : memref<8x128xbf16, #tpu.memory_space<vmem>>, vector<8x128xbf16>
      tpu.vector_store %arg13[%64, %c0_33], %63 {strides = array<i32>} : memref<8x128xbf16, #tpu.memory_space<vmem>>, vector<8x128xbf16>,
    } else {
    }
    %c1_i32 = arith.constant 1 : i32
    %10 = arith.cmpi sge, %arg0, %c1_i32 : i32
    %c10_i32 = arith.constant 10 : i32
    %11 = arith.cmpi sle, %arg0, %c10_i32 : i32
    %12 = arith.andi %10, %11 : i1
    %c2_i32 = arith.constant 2 : i32
    %c0_i32_4 = arith.constant 0 : i32
    %13 = arith.cmpi eq, %c2_i32, %c0_i32_4 : i32
    %c1_i32_5 = arith.constant 1 : i32
    %14 = arith.select %13, %c1_i32_5, %c2_i32 : i32
    %15 = arith.remsi %arg0, %14 : i32
    %c0_i32_6 = arith.constant 0 : i32
    %16 = arith.cmpi ne, %15, %c0_i32_6 : i32
    %c0_i32_7 = arith.constant 0 : i32
    %17 = arith.cmpi slt, %15, %c0_i32_7 : i32
    %c0_i32_8 = arith.constant 0 : i32
    %18 = arith.cmpi slt, %14, %c0_i32_8 : i32
    %19 = arith.xori %17, %18 : i1
    %20 = arith.andi %19, %16 : i1
    %21 = arith.addi %15, %14 : i32
    %22 = arith.select %20, %21, %15 : i32
    %c1_i32_9 = arith.constant 1 : i32
    %23 = arith.cmpi eq, %22, %c1_i32_9 : i32
    %24 = arith.andi %12, %23 : i1
    %25 = arith.extui %24 : i1 to i32
    %c0_i32_10 = arith.constant 0 : i32
    %26 = arith.cmpi ne, %25, %c0_i32_10 : i32
    scf.if %26 {
      %44 = arith.index_cast %1 : i32 to index
      %c0 = arith.constant 0 : index
      %45 = vector.load %arg7[%44, %c0] : memref<8x8xbf16, #tpu.memory_space<vmem>>, vector<8x8xbf16>
      %c0_20 = arith.constant 0 : index
      %c0_21 = arith.constant 0 : index
      %46 = vector.load %arg11[%c0_20, %c0_21] : memref<8x128xbf16, #tpu.memory_space<vmem>>, vector<8x128xbf16>
      %cst = arith.constant dense<0.000000e+00> : vector<8x128xf32>
      %47 = tpu.matmul %45, %46, %cst {dimension_numbers = #tpu.dot_dimension_numbers<[1], [0], [0], [1], [0, 0, 1, 1], [], []>} : vector<8x8xbf16>, vector<8x128xbf16>, vector<8x128xf32> -> vector<8x128xf32>
      %48 = arith.index_cast %1 : i32 to index
      %c0_22 = arith.constant 0 : index
      %49 = vector.load %arg13[%48, %c0_22] : memref<8x128xbf16, #tpu.memory_space<vmem>>, vector<8x128xbf16>
      %50 = arith.extf %49 : vector<8x128xbf16> to vector<8x128xf32>
      %51 = arith.addf %47, %50 : vector<8x128xf32>
      %52 = arith.truncf %51 : vector<8x128xf32> to vector<8x128xbf16>
      %53 = arith.index_cast %1 : i32 to index
      %c0_23 = arith.constant 0 : index
      %54 = vector.load %arg12[%53, %c0_23] : memref<8x128xbf16, #tpu.memory_space<vmem>>, vector<8x128xbf16>
      tpu.vector_store %arg12[%53, %c0_23], %52 {strides = array<i32>} : memref<8x128xbf16, #tpu.memory_space<vmem>>, vector<8x128xbf16>,
    } else {
    }
    %c2_i32_11 = arith.constant 2 : i32
    %c0_i32_12 = arith.constant 0 : i32
    %27 = arith.cmpi eq, %c2_i32_11, %c0_i32_12 : i32
    %c1_i32_13 = arith.constant 1 : i32
    %28 = arith.select %27, %c1_i32_13, %c2_i32_11 : i32
    %29 = arith.remsi %arg0, %28 : i32
    %c0_i32_14 = arith.constant 0 : i32
    %30 = arith.cmpi ne, %29, %c0_i32_14 : i32
    %c0_i32_15 = arith.constant 0 : i32
    %31 = arith.cmpi slt, %29, %c0_i32_15 : i32
    %c0_i32_16 = arith.constant 0 : i32
    %32 = arith.cmpi slt, %28, %c0_i32_16 : i32
    %33 = arith.xori %31, %32 : i1
    %34 = arith.andi %33, %30 : i1
    %35 = arith.addi %29, %28 : i32
    %36 = arith.select %34, %35, %29 : i32
    %c0_i32_17 = arith.constant 0 : i32
    %37 = arith.cmpi eq, %36, %c0_i32_17 : i32
    %38 = arith.andi %12, %37 : i1
    %39 = arith.extui %38 : i1 to i32
    %c0_i32_18 = arith.constant 0 : i32
    %40 = arith.cmpi ne, %39, %c0_i32_18 : i32
    scf.if %40 {
      %44 = arith.index_cast %1 : i32 to index
      %c0 = arith.constant 0 : index
      %45 = vector.load %arg7[%44, %c0] : memref<8x8xbf16, #tpu.memory_space<vmem>>, vector<8x8xbf16>
      %c0_20 = arith.constant 0 : index
      %c0_21 = arith.constant 0 : index
      %46 = vector.load %arg12[%c0_20, %c0_21] : memref<8x128xbf16, #tpu.memory_space<vmem>>, vector<8x128xbf16>
      %cst = arith.constant dense<0.000000e+00> : vector<8x128xf32>
      %47 = tpu.matmul %45, %46, %cst {dimension_numbers = #tpu.dot_dimension_numbers<[1], [0], [0], [1], [0, 0, 1, 1], [], []>} : vector<8x8xbf16>, vector<8x128xbf16>, vector<8x128xf32> -> vector<8x128xf32>
      %48 = arith.index_cast %1 : i32 to index
      %c0_22 = arith.constant 0 : index
      %49 = vector.load %arg13[%48, %c0_22] : memref<8x128xbf16, #tpu.memory_space<vmem>>, vector<8x128xbf16>
      %50 = arith.extf %49 : vector<8x128xbf16> to vector<8x128xf32>
      %51 = arith.addf %47, %50 : vector<8x128xf32>
      %52 = arith.truncf %51 : vector<8x128xf32> to vector<8x128xbf16>
      %53 = arith.index_cast %1 : i32 to index
      %c0_23 = arith.constant 0 : index
      %54 = vector.load %arg11[%53, %c0_23] : memref<8x128xbf16, #tpu.memory_space<vmem>>, vector<8x128xbf16>
      tpu.vector_store %arg11[%53, %c0_23], %52 {strides = array<i32>} : memref<8x128xbf16, #tpu.memory_space<vmem>>, vector<8x128xbf16>,
      %c10_i32_24 = arith.constant 10 : i32
      %55 = arith.cmpi eq, %arg0, %c10_i32_24 : i32
      %56 = arith.extui %55 : i1 to i32
      %c0_i32_25 = arith.constant 0 : i32
      %57 = arith.cmpi ne, %56, %c0_i32_25 : i32
      scf.if %57 {
        %c0_26 = arith.constant 0 : index
        %c0_27 = arith.constant 0 : index
        %58 = vector.load %arg9[%c0_26, %c0_27] : memref<8x128xf32, #tpu.memory_space<vmem>>, vector<8x128xf32>
        tpu.vector_store %arg9[%c0_26, %c0_27], %51 {strides = array<i32>} : memref<8x128xf32, #tpu.memory_space<vmem>>, vector<8x128xf32>,
        %59 = tpu.iota {dimensions = array<i32: 1>} : vector<8x128xi32>
        %c4_i32 = arith.constant 4 : i32
        %60 = vector.broadcast %c4_i32 : i32 to vector<8x128xi32>
        %61 = arith.cmpi slt, %59, %60 : vector<8x128xi32>
        %cst_28 = arith.constant -1.000000e+30 : f32
        %62 = vector.broadcast %cst_28 : f32 to vector<8x128xf32>
        %63 = arith.select %61, %51, %62 : vector<8x128xi1>, vector<8x128xf32>
        %cst_29 = arith.constant dense<0xFF800000> : vector<8xf32>
        %64 = vector.multi_reduction <maximumf>, %63, %cst_29 [1] : vector<8x128xf32> to vector<8xf32>
        %65 = vector.shape_cast %64 : vector<8xf32> to vector<8x1xf32>
        %66 = vector.broadcast %65 : vector<8x1xf32> to vector<8x128xf32>
        %67 = arith.subf %63, %66 : vector<8x128xf32>
        %68 = math.exp %67 : vector<8x128xf32>
        %cst_30 = arith.constant 0.000000e+00 : f32
        %69 = vector.broadcast %cst_30 : f32 to vector<8x128xf32>
        %70 = arith.select %61, %68, %69 : vector<8x128xi1>, vector<8x128xf32>
        %cst_31 = arith.constant dense<0.000000e+00> : vector<8xf32>
        %71 = vector.multi_reduction <add>, %70, %cst_31 [1] : vector<8x128xf32> to vector<8xf32>
        %72 = vector.shape_cast %71 : vector<8xf32> to vector<8x1xf32>
        %73 = math.log %72 : vector<8x1xf32>
        %74 = vector.broadcast %73 : vector<8x1xf32> to vector<8x128xf32>
        %75 = arith.subf %67, %74 : vector<8x128xf32>
        %c0_32 = arith.constant 0 : index
        %c0_33 = arith.constant 0 : index
        %76 = vector.load %arg8[%c0_32, %c0_33] : memref<8x128xf32, #tpu.memory_space<vmem>>, vector<8x128xf32>
        tpu.vector_store %arg8[%c0_32, %c0_33], %75 {strides = array<i32>} : memref<8x128xf32, #tpu.memory_space<vmem>>, vector<8x128xf32>,
        %77 = tpu.iota {dimensions = array<i32: 0>} : vector<8x128xi32>
        %78 = vector.broadcast %1 : i32 to vector<8x128xi32>
        %79 = arith.addi %77, %78 : vector<8x128xi32>
        %c8_i32_34 = arith.constant 8 : i32
        %80 = vector.broadcast %c8_i32_34 : i32 to vector<8x128xi32>
        %81 = arith.cmpi slt, %79, %80 : vector<8x128xi32>
        %82 = arith.extf %52 : vector<8x128xbf16> to vector<8x128xf32>
        %cst_35 = arith.constant -1.000000e+30 : f32
        %83 = vector.broadcast %cst_35 : f32 to vector<8x128xf32>
        %84 = arith.select %81, %82, %83 : vector<8x128xi1>, vector<8x128xf32>
        %cst_36 = arith.constant dense<0xFF800000> : vector<128xf32>
        %85 = vector.multi_reduction <maximumf>, %84, %cst_36 [0] : vector<8x128xf32> to vector<128xf32>
        %86 = vector.shape_cast %85 : vector<128xf32> to vector<1x128xf32>
        %c0_37 = arith.constant 0 : index
        %c0_38 = arith.constant 0 : index
        %87 = vector.load %arg14[%c0_37, %c0_38] : memref<1x128xf32, #tpu.memory_space<vmem>>, vector<1x128xf32>
        %88 = arith.maximumf %87, %86 : vector<1x128xf32>
        %89 = vector.broadcast %88 : vector<1x128xf32> to vector<8x128xf32>
        %90 = arith.subf %84, %89 : vector<8x128xf32>
        %91 = math.exp %90 : vector<8x128xf32>
        %cst_39 = arith.constant 0.000000e+00 : f32
        %92 = vector.broadcast %cst_39 : f32 to vector<8x128xf32>
        %93 = arith.select %81, %91, %92 : vector<8x128xi1>, vector<8x128xf32>
        %c0_40 = arith.constant 0 : index
        %c0_41 = arith.constant 0 : index
        %94 = vector.load %arg15[%c0_40, %c0_41] : memref<1x128xf32, #tpu.memory_space<vmem>>, vector<1x128xf32>
        %95 = arith.subf %87, %88 : vector<1x128xf32>
        %96 = math.exp %95 : vector<1x128xf32>
        %97 = arith.mulf %94, %96 : vector<1x128xf32>
        %cst_42 = arith.constant dense<0.000000e+00> : vector<128xf32>
        %98 = vector.multi_reduction <add>, %93, %cst_42 [0] : vector<8x128xf32> to vector<128xf32>
        %99 = vector.shape_cast %98 : vector<128xf32> to vector<1x128xf32>
        %100 = arith.addf %97, %99 : vector<1x128xf32>
        %c0_43 = arith.constant 0 : index
        %c0_44 = arith.constant 0 : index
        %101 = vector.load %arg15[%c0_43, %c0_44] : memref<1x128xf32, #tpu.memory_space<vmem>>, vector<1x128xf32>
        tpu.vector_store %arg15[%c0_43, %c0_44], %100 {strides = array<i32>} : memref<1x128xf32, #tpu.memory_space<vmem>>, vector<1x128xf32>,
        %c0_45 = arith.constant 0 : index
        %c0_46 = arith.constant 0 : index
        %102 = vector.load %arg14[%c0_45, %c0_46] : memref<1x128xf32, #tpu.memory_space<vmem>>, vector<1x128xf32>
        tpu.vector_store %arg14[%c0_45, %c0_46], %88 {strides = array<i32>} : memref<1x128xf32, #tpu.memory_space<vmem>>, vector<1x128xf32>,
      } else {
      }
    } else {
    }
    %c11_i32 = arith.constant 11 : i32
    %41 = arith.cmpi eq, %arg0, %c11_i32 : i32
    %42 = arith.extui %41 : i1 to i32
    %c0_i32_19 = arith.constant 0 : i32
    %43 = arith.cmpi ne, %42, %c0_i32_19 : i32
    scf.if %43 {
      %44 = arith.index_cast %1 : i32 to index
      %c0 = arith.constant 0 : index
      %45 = vector.load %arg11[%44, %c0] : memref<8x128xbf16, #tpu.memory_space<vmem>>, vector<8x128xbf16>
      %46 = arith.extf %45 : vector<8x128xbf16> to vector<8x128xf32>
      %47 = tpu.iota {dimensions = array<i32: 0>} : vector<8x128xi32>
      %48 = vector.broadcast %1 : i32 to vector<8x128xi32>
      %49 = arith.addi %47, %48 : vector<8x128xi32>
      %c8_i32_20 = arith.constant 8 : i32
      %50 = vector.broadcast %c8_i32_20 : i32 to vector<8x128xi32>
      %51 = arith.cmpi slt, %49, %50 : vector<8x128xi32>
      %c0_21 = arith.constant 0 : index
      %c0_22 = arith.constant 0 : index
      %52 = vector.load %arg14[%c0_21, %c0_22] : memref<1x128xf32, #tpu.memory_space<vmem>>, vector<1x128xf32>
      %53 = vector.broadcast %52 : vector<1x128xf32> to vector<8x128xf32>
      %54 = arith.subf %46, %53 : vector<8x128xf32>
      %55 = math.exp %54 : vector<8x128xf32>
      %cst = arith.constant 0.000000e+00 : f32
      %56 = vector.broadcast %cst : f32 to vector<8x128xf32>
      %57 = arith.select %51, %55, %56 : vector<8x128xi1>, vector<8x128xf32>
      %c0_23 = arith.constant 0 : index
      %c0_24 = arith.constant 0 : index
      %58 = vector.load %arg15[%c0_23, %c0_24] : memref<1x128xf32, #tpu.memory_space<vmem>>, vector<1x128xf32>
      %59 = tpu.reciprocal %58 {approx = true} : vector<1x128xf32> -> vector<1x128xf32>
      %60 = vector.broadcast %59 : vector<1x128xf32> to vector<8x128xf32>
      %61 = arith.mulf %57, %60 : vector<8x128xf32>
      %c0_25 = arith.constant 0 : index
      %c0_26 = arith.constant 0 : index
      %62 = vector.load %arg10[%c0_25, %c0_26] : memref<8x128xf32, #tpu.memory_space<vmem>>, vector<8x128xf32>
      tpu.vector_store %arg10[%c0_25, %c0_26], %61 {strides = array<i32>} : memref<8x128xf32, #tpu.memory_space<vmem>>, vector<8x128xf32>,
    } else {
    }
    return
  }
  func.func @transform_0(%arg0: i32, %arg1: i32) -> (i32, i32) {
    %c0_i32 = arith.constant 0 : i32
    %0 = arith.cmpi eq, %arg0, %c0_i32 : i32
    %c0_i32_0 = arith.constant 0 : i32
    %1 = arith.select %0, %arg1, %c0_i32_0 : i32
    %c0_i32_1 = arith.constant 0 : i32
    %c0_i32_2 = arith.constant 0 : i32
    return %1, %c0_i32_1 : i32, i32
  }
  func.func @transform_1(%arg0: i32, %arg1: i32) -> (i32, i32) {
    %c0_i32 = arith.constant 0 : i32
    %c0_i32_0 = arith.constant 0 : i32
    %c0_i32_1 = arith.constant 0 : i32
    return %c0_i32, %c0_i32_0 : i32, i32
  }
  func.func @transform_2(%arg0: i32, %arg1: i32) -> (i32, i32) {
    %c0_i32 = arith.constant 0 : i32
    %c0_i32_0 = arith.constant 0 : i32
    %c0_i32_1 = arith.constant 0 : i32
    return %c0_i32, %c0_i32_0 : i32, i32
  }
  func.func @transform_3(%arg0: i32, %arg1: i32) -> (i32, i32) {
    %c0_i32 = arith.constant 0 : i32
    %c0_i32_0 = arith.constant 0 : i32
    %c0_i32_1 = arith.constant 0 : i32
    return %c0_i32, %c0_i32_0 : i32, i32
  }
  func.func @transform_4(%arg0: i32, %arg1: i32) -> (i32, i32) {
    %c0_i32 = arith.constant 0 : i32
    %c0_i32_0 = arith.constant 0 : i32
    %c0_i32_1 = arith.constant 0 : i32
    return %c0_i32, %c0_i32_0 : i32, i32
  }
  func.func @transform_5(%arg0: i32, %arg1: i32) -> (i32, i32) {
    %c0_i32 = arith.constant 0 : i32
    %c0_i32_0 = arith.constant 0 : i32
    %c0_i32_1 = arith.constant 0 : i32
    return %c0_i32, %c0_i32_0 : i32, i32
  }
  func.func @transform_6(%arg0: i32, %arg1: i32) -> (i32, i32) {
    %c10_i32 = arith.constant 10 : i32
    %0 = arith.cmpi slt, %arg0, %c10_i32 : i32
    %c10_i32_0 = arith.constant 10 : i32
    %1 = arith.cmpi eq, %arg0, %c10_i32_0 : i32
    %c0_i32 = arith.constant 0 : i32
    %2 = arith.select %1, %arg1, %c0_i32 : i32
    %c0_i32_1 = arith.constant 0 : i32
    %3 = arith.select %0, %c0_i32_1, %2 : i32
    %c0_i32_2 = arith.constant 0 : i32
    %c0_i32_3 = arith.constant 0 : i32
    return %3, %c0_i32_2 : i32, i32
  }
  func.func @transform_7(%arg0: i32, %arg1: i32) -> (i32, i32) {
    %c10_i32 = arith.constant 10 : i32
    %0 = arith.cmpi slt, %arg0, %c10_i32 : i32
    %c10_i32_0 = arith.constant 10 : i32
    %1 = arith.cmpi eq, %arg0, %c10_i32_0 : i32
    %c0_i32 = arith.constant 0 : i32
    %2 = arith.select %1, %arg1, %c0_i32 : i32
    %c0_i32_1 = arith.constant 0 : i32
    %3 = arith.select %0, %c0_i32_1, %2 : i32
    %c0_i32_2 = arith.constant 0 : i32
    %c0_i32_3 = arith.constant 0 : i32
    return %3, %c0_i32_2 : i32, i32
  }
  func.func @transform_8(%arg0: i32, %arg1: i32) -> (i32, i32) {
    %c10_i32 = arith.constant 10 : i32
    %0 = arith.cmpi sle, %arg0, %c10_i32 : i32
    %c0_i32 = arith.constant 0 : i32
    %1 = arith.select %0, %c0_i32, %arg1 : i32
    %c0_i32_0 = arith.constant 0 : i32
    %c0_i32_1 = arith.constant 0 : i32
    return %1, %c0_i32_0 : i32, i32
  }
}

</mosaic_0001>

<llo_original>
// kernel: app_forward.1
$region0: #{app_forward.1}
  #allocation0 [shape = 'u32[]', space=smem, size = 0x4, offset = 0x4, fixed_abs, tag = 'smem constant byte address 0x4 - core index']
  #allocation1 [shape = 'u32[144,128]{1,0:T(1,128)}', space=vmem, size = 0x12000, scoped, tag = 'internal scratch']
  #allocation2 [shape = 'bf16[8,128]{1,0:T(8,128)(2,1)}', space=vmem, size = 0x800, scoped, tag = 'scratch operand']
  #allocation3 [shape = 'bf16[8,128]{1,0:T(8,128)(2,1)}', space=vmem, size = 0x800, scoped, tag = 'scratch operand']
  #allocation4 [shape = 'bf16[8,128]{1,0:T(8,128)(2,1)}', space=vmem, size = 0x800, scoped, tag = 'scratch operand']
  #allocation5 [shape = 'f32[1,128]{1,0:T(1,128)}', space=vmem, size = 0x200, scoped, tag = 'scratch operand']
  #allocation6 [shape = 'f32[1,128]{1,0:T(1,128)}', space=vmem, size = 0x200, scoped, tag = 'scratch operand']
  %s0 = inlined_call_operand.vmem [shape: bf16[8,32], index: 0, kind: input, shape index: {}]
  %s1 = inlined_call_operand.vmem [shape: bf16[32,32], index: 1, kind: input, shape index: {}]
  %s2 = inlined_call_operand.vmem [shape: f32[1,32], index: 2, kind: input, shape index: {}]
  %s3 = inlined_call_operand.vmem [shape: bf16[32,128], index: 3, kind: input, shape index: {}]
  %s4 = inlined_call_operand.vmem [shape: f32[1,128], index: 4, kind: input, shape index: {}]
  %s5 = inlined_call_operand.vmem [shape: bf16[8,8], index: 5, kind: input, shape index: {}]
  %s6 = inlined_call_operand.vmem [shape: f32[8,128], index: 6, kind: output, shape index: {0}]
  %s7 = inlined_call_operand.vmem [shape: f32[8,128], index: 7, kind: output, shape index: {1}]
  %s8 = inlined_call_operand.vmem [shape: f32[8,128], index: 8, kind: output, shape index: {2}]
  %9 = xla_tuple %s6, %s7, %s8
  %s10 = sld [smem:[#allocation0]]
  $region97: #{app_forward.1} parent=0
    _
  %s12 = ssub.s32 1, %s10
  %s13 = scalar_select 0, %s12, %s10
  loop: start=0, step=1, limit=14
  $region2: #{app_forward.1} parent=0 // loop_pre_header
    _
  $region3: #{app_forward.1} parent=0 // loop_header
    %s15 = sphi 0, %s19
    %p16 = scmp.ge.s32.totalorder %s15, 14
    %s22 = sphi 0, %s34
    %s23 = sphi 0, %s30
    %s24 = sphi 0, %s22
    %s25 = sphi 0, %s23
    %s26 = sphi 0, %s24
    %s27 = sphi 0, %s25
    %s41 = sphi 0, %s43
    %s44 = sphi 0, %s41
    %s45 = sphi 0, %s44
    %s61 = sphi 0, %s45
    %s65 = sphi 0, %s65
    %s67 = sphi 0, %s65
    %s68 = sphi 0, %s67
    %s82 = sphi 0, %s68
    %s86 = sphi 0, %s86
    %s88 = sphi 0, %s86
    %s89 = sphi 0, %s88
    %s103 = sphi 0, %s89
    %s107 = sphi 0, %s107
    %s109 = sphi 0, %s107
    %s110 = sphi 0, %s109
    %s124 = sphi 0, %s110
    %s128 = sphi 0, %s128
    %s130 = sphi 0, %s128
    %s131 = sphi 0, %s130
    %s145 = sphi 0, %s131
    %s149 = sphi 0, %s149
    %s151 = sphi 0, %s149
    %s152 = sphi 0, %s151
    %s166 = sphi 0, %s152
    %s180 = sphi 0, %s182
    %s183 = sphi 0, %s180
    %s184 = sphi 0, %s183
    %s200 = sphi 0, %s184
    %s214 = sphi 0, %s216
    %s217 = sphi 0, %s214
    %s218 = sphi 0, %s217
    %s234 = sphi 0, %s218
    %s244 = sphi 0, %s246
    %s247 = sphi 0, %s244
    %s248 = sphi 0, %s247
    %s264 = sphi 0, %s248
  $region4: #{app_forward.1} parent=0 // loop_header_branch
    %18 = sbr.rel (%p16) target = $region8
  $region5: #{app_forward.1} parent=0 // loop_body
    %s20 = ssub.s32 %s15, 1
    %s21 = ssub.s32 %s15, 2
    %s28 = sadd.s32 1, %s23
    %p29 = scmp.ge.s32.totalorder %s28, 1
    %s30 = scalar_select %p29, 0, %s28
    %s31 = sadd.s32 1, %s22
    %s32 = scalar_select %p29, %s31, %s22
    %p33 = scmp.ge.s32.totalorder %s32, 12
    %s34 = scalar_select %p33, 0, %s32
    %p35 = scmp.eq.s32.totalorder %s22, 0
    %s36 = scalar_select %p35, %s23, 0
    %p37 = scmp.eq.s32.totalorder %s34, 0
    %s38 = scalar_select %p37, %s30, 0
    %s39 = ssub.s32 %s36, %s38
    %p40 = scmp.eq.s32.totalorder %s39, 0
    %s42 = sadd.s32 %s41, 1
    %s43 = scalar_select %p40, %s41, %s42
    %p46 = pneg %p40
    %p47 = scmp.eq.s32.totalorder %s15, 11
    %p48 = por %p46, %p47
    %p49 = scmp.ne.s32.totalorder %s41, %s44
    %p50 = scmp.eq.s32.totalorder %s15, 0
    %p51 = por %p49, %p50
    %p52 = scmp.ne.s32.totalorder %s41, %s44
    %p53 = scmp.eq.s32.totalorder %s20, 11
    %p54 = por %p52, %p53
    %p55 = scmp.ne.s32.totalorder %s44, %s45
    %p56 = scmp.eq.s32.totalorder %s20, 0
    %p57 = por %p55, %p56
    %p58 = scmp.ne.s32.totalorder %s44, %s45
    %p59 = scmp.eq.s32.totalorder %s21, 11
    %p60 = por %p58, %p59
    %p62 = scmp.ne.s32.totalorder %s45, %s61
    %p63 = scmp.eq.s32.totalorder %s21, 0
    %p64 = por %p62, %p63
    %s66 = sadd.s32 %s65, 1
    %p69 = scmp.eq.s32.totalorder %s15, 11
    %p70 = scmp.ne.s32.totalorder %s65, %s67
    %p71 = scmp.eq.s32.totalorder %s15, 0
    %p72 = por %p70, %p71
    %p73 = scmp.ne.s32.totalorder %s65, %s67
    %p74 = scmp.eq.s32.totalorder %s20, 11
    %p75 = por %p73, %p74
    %p76 = scmp.ne.s32.totalorder %s67, %s68
    %p77 = scmp.eq.s32.totalorder %s20, 0
    %p78 = por %p76, %p77
    %p79 = scmp.ne.s32.totalorder %s67, %s68
    %p80 = scmp.eq.s32.totalorder %s21, 11
    %p81 = por %p79, %p80
    %p83 = scmp.ne.s32.totalorder %s68, %s82
    %p84 = scmp.eq.s32.totalorder %s21, 0
    %p85 = por %p83, %p84
    %s87 = sadd.s32 %s86, 1
    %p90 = scmp.eq.s32.totalorder %s15, 11
    %p91 = scmp.ne.s32.totalorder %s86, %s88
    %p92 = scmp.eq.s32.totalorder %s15, 0
    %p93 = por %p91, %p92
    %p94 = scmp.ne.s32.totalorder %s86, %s88
    %p95 = scmp.eq.s32.totalorder %s20, 11
    %p96 = por %p94, %p95
    %p97 = scmp.ne.s32.totalorder %s88, %s89
    %p98 = scmp.eq.s32.totalorder %s20, 0
    %p99 = por %p97, %p98
    %p100 = scmp.ne.s32.totalorder %s88, %s89
    %p101 = scmp.eq.s32.totalorder %s21, 11
    %p102 = por %p100, %p101
    %p104 = scmp.ne.s32.totalorder %s89, %s103
    %p105 = scmp.eq.s32.totalorder %s21, 0
    %p106 = por %p104, %p105
    %s108 = sadd.s32 %s107, 1
    %p111 = scmp.eq.s32.totalorder %s15, 11
    %p112 = scmp.ne.s32.totalorder %s107, %s109
    %p113 = scmp.eq.s32.totalorder %s15, 0
    %p114 = por %p112, %p113
    %p115 = scmp.ne.s32.totalorder %s107, %s109
    %p116 = scmp.eq.s32.totalorder %s20, 11
    %p117 = por %p115, %p116
    %p118 = scmp.ne.s32.totalorder %s109, %s110
    %p119 = scmp.eq.s32.totalorder %s20, 0
    %p120 = por %p118, %p119
    %p121 = scmp.ne.s32.totalorder %s109, %s110
    %p122 = scmp.eq.s32.totalorder %s21, 11
    %p123 = por %p121, %p122
    %p125 = scmp.ne.s32.totalorder %s110, %s124
    %p126 = scmp.eq.s32.totalorder %s21, 0
    %p127 = por %p125, %p126
    %s129 = sadd.s32 %s128, 1
    %p132 = scmp.eq.s32.totalorder %s15, 11
    %p133 = scmp.ne.s32.totalorder %s128, %s130
    %p134 = scmp.eq.s32.totalorder %s15, 0
    %p135 = por %p133, %p134
    %p136 = scmp.ne.s32.totalorder %s128, %s130
    %p137 = scmp.eq.s32.totalorder %s20, 11
    %p138 = por %p136, %p137
    %p139 = scmp.ne.s32.totalorder %s130, %s131
    %p140 = scmp.eq.s32.totalorder %s20, 0
    %p141 = por %p139, %p140
    %p142 = scmp.ne.s32.totalorder %s130, %s131
    %p143 = scmp.eq.s32.totalorder %s21, 11
    %p144 = por %p142, %p143
    %p146 = scmp.ne.s32.totalorder %s131, %s145
    %p147 = scmp.eq.s32.totalorder %s21, 0
    %p148 = por %p146, %p147
    %s150 = sadd.s32 %s149, 1
    %p153 = scmp.eq.s32.totalorder %s15, 11
    %p154 = scmp.ne.s32.totalorder %s149, %s151
    %p155 = scmp.eq.s32.totalorder %s15, 0
    %p156 = por %p154, %p155
    %p157 = scmp.ne.s32.totalorder %s149, %s151
    %p158 = scmp.eq.s32.totalorder %s20, 11
    %p159 = por %p157, %p158
    %p160 = scmp.ne.s32.totalorder %s151, %s152
    %p161 = scmp.eq.s32.totalorder %s20, 0
    %p162 = por %p160, %p161
    %p163 = scmp.ne.s32.totalorder %s151, %s152
    %p164 = scmp.eq.s32.totalorder %s21, 11
    %p165 = por %p163, %p164
    %p167 = scmp.ne.s32.totalorder %s152, %s166
    %p168 = scmp.eq.s32.totalorder %s21, 0
    %p169 = por %p167, %p168
    %p170 = scmp.lt.s32.totalorder %s22, 10
    %p171 = scmp.eq.s32.totalorder %s22, 10
    %s172 = scalar_select %p171, %s23, 0
    %s173 = scalar_select %p170, 0, %s172
    %p174 = scmp.lt.s32.totalorder %s34, 10
    %p175 = scmp.eq.s32.totalorder %s34, 10
    %s176 = scalar_select %p175, %s30, 0
    %s177 = scalar_select %p174, 0, %s176
    %s178 = ssub.s32 %s173, %s177
    %p179 = scmp.eq.s32.totalorder %s178, 0
    %s181 = sadd.s32 %s180, 1
    %s182 = scalar_select %p179, %s180, %s181
    %p185 = pneg %p179
    %p186 = scmp.eq.s32.totalorder %s15, 11
    %p187 = por %p185, %p186
    %p188 = scmp.ne.s32.totalorder %s180, %s183
    %p189 = scmp.eq.s32.totalorder %s15, 0
    %p190 = por %p188, %p189
    %p191 = scmp.ne.s32.totalorder %s180, %s183
    %p192 = scmp.eq.s32.totalorder %s20, 11
    %p193 = por %p191, %p192
    %p194 = scmp.ne.s32.totalorder %s183, %s184
    %p195 = scmp.eq.s32.totalorder %s20, 0
    %p196 = por %p194, %p195
    %p197 = scmp.ne.s32.totalorder %s183, %s184
    %p198 = scmp.eq.s32.totalorder %s21, 11
    %p199 = por %p197, %p198
    %p201 = scmp.ne.s32.totalorder %s184, %s200
    %p202 = scmp.eq.s32.totalorder %s21, 0
    %p203 = por %p201, %p202
    %p204 = scmp.lt.s32.totalorder %s22, 10
    %p205 = scmp.eq.s32.totalorder %s22, 10
    %s206 = scalar_select %p205, %s23, 0
    %s207 = scalar_select %p204, 0, %s206
    %p208 = scmp.lt.s32.totalorder %s34, 10
    %p209 = scmp.eq.s32.totalorder %s34, 10
    %s210 = scalar_select %p209, %s30, 0
    %s211 = scalar_select %p208, 0, %s210
    %s212 = ssub.s32 %s207, %s211
    %p213 = scmp.eq.s32.totalorder %s212, 0
    %s215 = sadd.s32 %s214, 1
    %s216 = scalar_select %p213, %s214, %s215
    %p219 = pneg %p213
    %p220 = scmp.eq.s32.totalorder %s15, 11
    %p221 = por %p219, %p220
    %p222 = scmp.ne.s32.totalorder %s214, %s217
    %p223 = scmp.eq.s32.totalorder %s15, 0
    %p224 = por %p222, %p223
    %p225 = scmp.ne.s32.totalorder %s214, %s217
    %p226 = scmp.eq.s32.totalorder %s20, 11
    %p227 = por %p225, %p226
    %p228 = scmp.ne.s32.totalorder %s217, %s218
    %p229 = scmp.eq.s32.totalorder %s20, 0
    %p230 = por %p228, %p229
    %p231 = scmp.ne.s32.totalorder %s217, %s218
    %p232 = scmp.eq.s32.totalorder %s21, 11
    %p233 = por %p231, %p232
    %p235 = scmp.ne.s32.totalorder %s218, %s234
    %p236 = scmp.eq.s32.totalorder %s21, 0
    %p237 = por %p235, %p236
    %p238 = scmp.le.s32.totalorder %s22, 10
    %s239 = scalar_select %p238, 0, %s23
    %p240 = scmp.le.s32.totalorder %s34, 10
    %s241 = scalar_select %p240, 0, %s30
    %s242 = ssub.s32 %s239, %s241
    %p243 = scmp.eq.s32.totalorder %s242, 0
    %s245 = sadd.s32 %s244, 1
    %s246 = scalar_select %p243, %s244, %s245
    %p249 = pneg %p243
    %p250 = scmp.eq.s32.totalorder %s15, 11
    %p251 = por %p249, %p250
    %p252 = scmp.ne.s32.totalorder %s244, %s247
    %p253 = scmp.eq.s32.totalorder %s15, 0
    %p254 = por %p252, %p253
    %p255 = scmp.ne.s32.totalorder %s244, %s247
    %p256 = scmp.eq.s32.totalorder %s20, 11
    %p257 = por %p255, %p256
    %p258 = scmp.ne.s32.totalorder %s247, %s248
    %p259 = scmp.eq.s32.totalorder %s20, 0
    %p260 = por %p258, %p259
    %p261 = scmp.ne.s32.totalorder %s247, %s248
    %p262 = scmp.eq.s32.totalorder %s21, 11
    %p263 = por %p261, %p262
    %p265 = scmp.ne.s32.totalorder %s248, %s264
    %p266 = scmp.eq.s32.totalorder %s21, 0
    %p267 = por %p265, %p266
    %p268 = scmp.le.s32.totalorder 1, %s15
    %p269 = scmp.lt.s32.totalorder %s15, 13
    %p270 = pnand %p268, %p269
    %p271 = pneg %p270
    // Predicated region
    $region9: #{app_forward.1} parent=5 // pred_check
      _
    $region10: #{app_forward.1} parent=5 // pred_check_branch
      %273 = sbr.rel (%p270) target = $region12
    $region11: #{app_forward.1} parent=5 // pred_region
      %s274 = ssub.s32 %s15, 1
      // Predicated region
      $region13: #{app_forward.1} parent=11 // pred_check
        %p275 = pneg %p78
      $region14: #{app_forward.1} parent=11 // pred_check_branch
        %277 = sbr.rel (%p275) target = $region16
      $region15: #{app_forward.1} parent=11 // pred_region
        _
      $region16: #{app_forward.1} parent=11 // pred_fallthru
        _
      // Predicated region
      $region17: #{app_forward.1} parent=11 // pred_check
        %p278 = pneg %p99
      $region18: #{app_forward.1} parent=11 // pred_check_branch
        %280 = sbr.rel (%p278) target = $region20
      $region19: #{app_forward.1} parent=11 // pred_region
        _
      $region20: #{app_forward.1} parent=11 // pred_fallthru
        _
      // Predicated region
      $region21: #{app_forward.1} parent=11 // pred_check
        %p281 = pneg %p120
      $region22: #{app_forward.1} parent=11 // pred_check_branch
        %283 = sbr.rel (%p281) target = $region24
      $region23: #{app_forward.1} parent=11 // pred_region
        _
      $region24: #{app_forward.1} parent=11 // pred_fallthru
        _
      // Predicated region
      $region25: #{app_forward.1} parent=11 // pred_check
        %p284 = pneg %p141
      $region26: #{app_forward.1} parent=11 // pred_check_branch
        %286 = sbr.rel (%p284) target = $region28
      $region27: #{app_forward.1} parent=11 // pred_region
        _
      $region28: #{app_forward.1} parent=11 // pred_fallthru
        _
      // Predicated region
      $region29: #{app_forward.1} parent=11 // pred_check
        %p287 = pneg %p162
      $region30: #{app_forward.1} parent=11 // pred_check_branch
        %289 = sbr.rel (%p287) target = $region32
      $region31: #{app_forward.1} parent=11 // pred_region
        _
      $region32: #{app_forward.1} parent=11 // pred_fallthru
        _
    $region12: #{app_forward.1} parent=5 // pred_fallthru
      _
    %p290 = scmp.lt.s32.totalorder %s15, 12
    // Predicated region
    $region33: #{app_forward.1} parent=5 // pred_check
      %p291 = pneg %p290
    $region34: #{app_forward.1} parent=5 // pred_check_branch
      %293 = sbr.rel (%p291) target = $region36
    $region35: #{app_forward.1} parent=5 // pred_region
      // Predicated region
      $region37: #{app_forward.1} parent=35 // pred_check
        %p294 = pneg %p51
      $region38: #{app_forward.1} parent=35 // pred_check_branch
        %296 = sbr.rel (%p294) target = $region40
      $region39: #{app_forward.1} parent=35 // pred_region
        %p297 = scmp.eq.s32.totalorder %s22, 0
        %s298 = scalar_select %p297, %s23, 0
        %p299 = scmp.lt.s32.totalorder %s298, 0
        %s300 = scalar_select %p299, %s298, 0
        %s301 = smul.addr %s300, 4
        %s302 = scalar_lea.vmem %s0, %s301
        %p303 = scmp.eq.s32.totalorder %s22, 0
        %s304 = scalar_select %p303, %s23, 0
      $region40: #{app_forward.1} parent=35 // pred_fallthru
        _
    $region36: #{app_forward.1} parent=5 // pred_fallthru
      _
    %p305 = scmp.le.s32.totalorder 1, %s15
    %p306 = scmp.lt.s32.totalorder %s15, 13
    %p307 = pnand %p305, %p306
    %p308 = pneg %p307
    // Predicated region
    $region41: #{app_forward.1} parent=5 // pred_check
      _
    $region42: #{app_forward.1} parent=5 // pred_check_branch
      %310 = sbr.rel (%p307) target = $region44
    $region43: #{app_forward.1} parent=5 // pred_region
      %s311 = ssub.s32 %s15, 1
      %p312 = scmp.eq.s32.totalorder %s24, 0
      %s313 = scalar_select %p312, %s25, 0
      %p314 = scmp.lt.s32.totalorder %s313, 0
      %s315 = scalar_select %p314, %s313, 0
      %s316 = smul.addr %s315, 4
      %s317 = scalar_lea.vmem %s0, %s316
      %p318 = pneg %p57
      %p319 = pneg %p54
      %p320 = pneg %p78
      %p321 = pneg %p75
      %p322 = pneg %p99
      %p323 = pneg %p96
      %p324 = pneg %p120
      %p325 = pneg %p117
      %p326 = pneg %p141
      %p327 = pneg %p138
      %p328 = pneg %p162
      %p329 = pneg %p159
      %p330 = pneg %p196
      %p331 = pneg %p193
      %p332 = scmp.lt.s32.totalorder %s24, 10
      %p333 = scmp.eq.s32.totalorder %s24, 10
      %s334 = scalar_select %p333, %s25, 0
      %s335 = scalar_select %p332, 0, %s334
      %p336 = scmp.lt.s32.totalorder %s335, 0
      %s337 = scalar_select %p336, %s335, 0
      %s338 = smul.addr %s337, 8
      %s339 = scalar_lea.vmem %s6, %s338
      %p340 = pneg %p230
      %p341 = pneg %p227
      %p342 = scmp.lt.s32.totalorder %s24, 10
      %p343 = scmp.eq.s32.totalorder %s24, 10
      %s344 = scalar_select %p343, %s25, 0
      %s345 = scalar_select %p342, 0, %s344
      %p346 = scmp.lt.s32.totalorder %s345, 0
      %s347 = scalar_select %p346, %s345, 0
      %s348 = smul.addr %s347, 8
      %s349 = scalar_lea.vmem %s7, %s348
      %p350 = pneg %p260
      %p351 = pneg %p257
      %p352 = scmp.le.s32.totalorder %s24, 10
      %s353 = scalar_select %p352, 0, %s25
      %p354 = scmp.lt.s32.totalorder %s353, 0
      %s355 = scalar_select %p354, %s353, 0
      %s356 = smul.addr %s355, 8
      %s357 = scalar_lea.vmem %s8, %s356
      %p358 = scmp.eq.s32.totalorder %s24, 0
      %s359 = scalar_select %p358, %s25, 0
      %p360 = scmp.lt.s32.totalorder %s359, 0
      %s361 = scalar_select %p360, %s359, 0
      %s362 = smul.addr %s361, 4
      %s363 = scalar_lea.vmem %s0, %s362
      %p364 = scmp.eq.s32.totalorder %s24, 0
      %s365 = scalar_select %p364, %s25, 0
      %p366 = scmp.lt.s32.totalorder %s24, 10
      %p367 = scmp.eq.s32.totalorder %s24, 10
      %s368 = scalar_select %p367, %s25, 0
      %s369 = scalar_select %p366, 0, %s368
      %p370 = scmp.lt.s32.totalorder %s369, 0
      %s371 = scalar_select %p370, %s369, 0
      %s372 = smul.addr %s371, 8
      %s373 = scalar_lea.vmem %s6, %s372
      %p374 = scmp.lt.s32.totalorder %s24, 10
      %p375 = scmp.eq.s32.totalorder %s24, 10
      %s376 = scalar_select %p375, %s25, 0
      %s377 = scalar_select %p374, 0, %s376
      %p378 = scmp.lt.s32.totalorder %s24, 10
      %p379 = scmp.eq.s32.totalorder %s24, 10
      %s380 = scalar_select %p379, %s25, 0
      %s381 = scalar_select %p378, 0, %s380
      %p382 = scmp.lt.s32.totalorder %s381, 0
      %s383 = scalar_select %p382, %s381, 0
      %s384 = smul.addr %s383, 8
      %s385 = scalar_lea.vmem %s7, %s384
      %p386 = scmp.lt.s32.totalorder %s24, 10
      %p387 = scmp.eq.s32.totalorder %s24, 10
      %s388 = scalar_select %p387, %s25, 0
      %s389 = scalar_select %p386, 0, %s388
      %p390 = scmp.le.s32.totalorder %s24, 10
      %s391 = scalar_select %p390, 0, %s25
      %p392 = scmp.lt.s32.totalorder %s391, 0
      %s393 = scalar_select %p392, %s391, 0
      %s394 = smul.addr %s393, 8
      %s395 = scalar_lea.vmem %s8, %s394
      %p396 = scmp.le.s32.totalorder %s24, 10
      %s397 = scalar_select %p396, 0, %s25
      %s399 = smul.u32 %s25, 8
      %p400 = scmp.eq.s32.totalorder %s24, 0
      %p401 = scmp.eq.s32.totalorder %s25, 0
      %p402 = pnand %p400, %p401
      %p403 = pneg %p402
      // Predicated region
      $region45: #{app_forward.1} parent=43 // pred_check
        _
      $region46: #{app_forward.1} parent=43 // pred_check_branch
        %405 = sbr.rel (%p402) target = $region48
      $region47: #{app_forward.1} parent=43 // pred_region
        %406 = vst [vmem:[#allocation5] sm:$0x1] -1e+30
        %407 = vst [vmem:[#allocation6] sm:$0x1] 0.0
      $region48: #{app_forward.1} parent=43 // pred_fallthru
        _
      // Predicated region
      $region49: #{app_forward.1} parent=43 // pred_check
        %p408 = pneg %p400
      $region50: #{app_forward.1} parent=43 // pred_check_branch
        %410 = sbr.rel (%p408) target = $region52
      $region51: #{app_forward.1} parent=43 // pred_region
        %v411 = vld [vmem:[%s363] sm:$0xf]
        %v412 = vld [vmem:[%s1] sm:$0xf]
        %v413 = vld [vmem:[%s1 + $0x4] sm:$0xf]
        %v414 = vld [vmem:[%s1 + $0x8] sm:$0xf]
        %v415 = vld [vmem:[%s1 + $0xc] sm:$0xf]
        %v416 = vld [vmem:[%s2] sm:$0x1]
        %v418 = vlaneseq
        %v419 = vshrl.u32 %v418, 7
        %v420 = vsub.s32 0, %v419
        %v421 = vrot.slane %v416, %v420
        %v427 = vunpack.c.l.b16 %v412
        %v428 = vunpack.c.l.b16 %v413
        %v429 = vunpack.c.l.b16 %v414
        %v430 = vunpack.c.l.b16 %v415
        %v431 = vpack.c.b16 %v428, %v427
        %v432 = vpack.c.b16 %v430, %v429
        %vm435 = vcmask 261120
        %v437 = vsel %vm435, %v411, 0
        %439 = vmatprep.subr.bf16.mxu0 0
        %440 = vmatpush1.bf16.msra.mxu0 %v431
        %441 = vmatprep.subr.bf16.mxu0 0
        %442 = vmatpush1.bf16.msra.mxu0 %v432
        %443 = vmatprep.subr.bf16.mxu0 0
        %444 = vmatpush1.bf16.msra.mxu0 0
        %445 = vmatprep.subr.bf16.mxu0 0
        %446 = vmatpush1.bf16.msra.mxu0 0
        %447 = vmatprep.subr.bf16.mxu0 0
        %448 = vmatpush1.bf16.msra.mxu0 0
        %449 = vmatprep.subr.bf16.mxu0 0
        %450 = vmatpush1.bf16.msra.mxu0 0
        %451 = vmatprep.subr.bf16.mxu0 0
        %452 = vmatpush1.bf16.msra.mxu0 0
        %453 = vmatprep.subr.bf16.mxu0 0
        %454 = vmatpush1.bf16.msra.mxu0 0
        %455 = vmatprep.subr.bf16.mxu0 0
        %456 = vmatpush1.bf16.msra.mxu0 0
        %457 = vmatprep.subr.bf16.mxu0 0
        %458 = vmatpush1.bf16.msra.mxu0 0
        %459 = vmatprep.subr.bf16.mxu0 0
        %460 = vmatpush1.bf16.msra.mxu0 0
        %461 = vmatprep.subr.bf16.mxu0 0
        %462 = vmatpush1.bf16.msra.mxu0 0
        %463 = vmatprep.subr.bf16.mxu0 0
        %464 = vmatpush1.bf16.msra.mxu0 0
        %465 = vmatprep.subr.bf16.mxu0 0
        %466 = vmatpush1.bf16.msra.mxu0 0
        %467 = vmatprep.subr.bf16.mxu0 0
        %468 = vmatpush1.bf16.msra.mxu0 0
        %469 = vmatprep.subr.bf16.mxu0 0
        %470 = vmatpush1.bf16.msra.mxu0 0
        %471 = vmatprep.mubr.bf16.mxu0 0
        %472 = vmatmul.mubr.bf16.gmra.mrb[0].mxu0 %v437
        %v473 = vpop.f32.mrb[0].mxu0
        %v474 = vadd.f32 %v421, %v473
        %v475 = vpop.f32.mrb[0].mxu0
        %v476 = vpop.f32.mrb[0].mxu0
        %v477 = vpop.f32.mrb[0].mxu0
        %478 = vdwg.mxu0
        %v479 = vmax.f32 %v474, 0.0
        %v480 = vpack.c.bf16 %v479, %v479
        %v481 = vld [vmem:[%s3] sm:$0xf]
        %v482 = vld [vmem:[%s3 + $0x4] sm:$0xf]
        %v483 = vld [vmem:[%s3 + $0x8] sm:$0xf]
        %v484 = vld [vmem:[%s3 + $0xc] sm:$0xf]
        %v485 = vld [vmem:[%s4] sm:$0x1]
        %v487 = vlaneseq
        %v488 = vshrl.u32 %v487, 7
        %v489 = vsub.s32 0, %v488
        %v490 = vrot.slane %v485, %v489
        %v496 = vunpack.c.l.b16 %v481
        %v497 = vunpack.c.l.b16 %v482
        %v498 = vunpack.c.l.b16 %v483
        %v499 = vunpack.c.l.b16 %v484
        %v500 = vpack.c.b16 %v497, %v496
        %v501 = vpack.c.b16 %v499, %v498
        %v505 = vsel %vm435, %v480, 0
        %507 = vmatprep.subr.bf16.mxu0 0
        %508 = vmatpush1.bf16.msra.mxu0 %v500
        %509 = vmatprep.subr.bf16.mxu0 0
        %510 = vmatpush1.bf16.msra.mxu0 %v501
        %511 = vmatprep.subr.bf16.mxu0 0
        %512 = vmatpush1.bf16.msra.mxu0 0
        %513 = vmatprep.subr.bf16.mxu0 0
        %514 = vmatpush1.bf16.msra.mxu0 0
        %515 = vmatprep.subr.bf16.mxu0 0
        %516 = vmatpush1.bf16.msra.mxu0 0
        %517 = vmatprep.subr.bf16.mxu0 0
        %518 = vmatpush1.bf16.msra.mxu0 0
        %519 = vmatprep.subr.bf16.mxu0 0
        %520 = vmatpush1.bf16.msra.mxu0 0
        %521 = vmatprep.subr.bf16.mxu0 0
        %522 = vmatpush1.bf16.msra.mxu0 0
        %523 = vmatprep.subr.bf16.mxu0 0
        %524 = vmatpush1.bf16.msra.mxu0 0
        %525 = vmatprep.subr.bf16.mxu0 0
        %526 = vmatpush1.bf16.msra.mxu0 0
        %527 = vmatprep.subr.bf16.mxu0 0
        %528 = vmatpush1.bf16.msra.mxu0 0
        %529 = vmatprep.subr.bf16.mxu0 0
        %530 = vmatpush1.bf16.msra.mxu0 0
        %531 = vmatprep.subr.bf16.mxu0 0
        %532 = vmatpush1.bf16.msra.mxu0 0
        %533 = vmatprep.subr.bf16.mxu0 0
        %534 = vmatpush1.bf16.msra.mxu0 0
        %535 = vmatprep.subr.bf16.mxu0 0
        %536 = vmatpush1.bf16.msra.mxu0 0
        %537 = vmatprep.subr.bf16.mxu0 0
        %538 = vmatpush1.bf16.msra.mxu0 0
        %539 = vmatprep.mubr.bf16.mxu0 0
        %540 = vmatmul.mubr.bf16.gmra.mrb[0].mxu0 %v505
        %v541 = vpop.f32.mrb[0].mxu0
        %v542 = vadd.f32 %v490, %v541
        %v543 = vpop.f32.mrb[0].mxu0
        %v544 = vpop.f32.mrb[0].mxu0
        %v545 = vpop.f32.mrb[0].mxu0
        %546 = vdwg.mxu0
        %v547 = vpack.c.bf16 %v542, %v542
        %s548 = sshra.s32 %s399, 3
        %s549 = sand.u32 %s399, 7
        %s550 = smul.addr %s548, 4
        %s551 = scalar_lea.vmem [#allocation2], %s550
        %552 = vst [vmem:[%s551] sm:$0xf] %v547
        %v553 = vmul.f32 %v542, 0.1
        %v554 = vpack.c.bf16 %v553, %v553
        %s555 = smul.addr %s548, 4
        %s556 = scalar_lea.vmem [#allocation4], %s555
        %557 = vst [vmem:[%s556] sm:$0xf] %v554
      $region52: #{app_forward.1} parent=43 // pred_fallthru
        _
      %p558 = scmp.ge.s32.totalorder %s24, 1
      %p559 = scmp.le.s32.totalorder %s24, 10
      %p560 = pnand %p558, %p559
      %p561 = pneg %p560
      %p562 = scmp.lt.s32.totalorder %s24, 0
      %s563 = ssub.s32 0, %s24
      %s564 = scalar_select %p562, %s563, %s24
      %s565 = sand.u32 %s564, 1
      %s566 = ssub.s32 0, %s565
      %s567 = scalar_select %p562, %s566, %s565
      %p568 = scmp.ne.s32.totalorder %s567, 0
      %p569 = scmp.lt.s32.totalorder %s567, 0
      %p570 = pnand %p569, %p568
      %p571 = pneg %p570
      %s572 = sadd.s32 %s567, 2
      %s573 = scalar_select %p571, %s572, %s567
      %p574 = scmp.eq.s32.totalorder %s573, 1
      %p575 = pnand %p561, %p574
      %p576 = pneg %p575
      // Predicated region
      $region53: #{app_forward.1} parent=43 // pred_check
        _
      $region54: #{app_forward.1} parent=43 // pred_check_branch
        %578 = sbr.rel (%p575) target = $region56
      $region55: #{app_forward.1} parent=43 // pred_region
        %s579 = sshra.s32 %s399, 3
        %s580 = sand.u32 %s399, 7
        %s581 = smul.addr %s579, 4
        %s582 = scalar_lea.vmem %s5, %s581
        %v583 = vld [vmem:[%s582] sm:$0xf]
        %v584 = vld [vmem:[#allocation2] sm:$0xf]
        %s585 = smul.addr %s579, 4
        %s586 = scalar_lea.vmem [#allocation4], %s585
        %v587 = vld [vmem:[%s586] sm:$0xf]
        %v588 = vunpack.c.l.bf16 %v587
        %vm589 = vcmask 64512
        %v591 = vsel %vm589, %v583, 0
        %vm593 = vcmask 1043456
        %v595 = vsel %vm593, %v584, 0
        %597 = vmatprep.subr.bf16.mxu0 0
        %598 = vmatpush1.bf16.msra.mxu0 %v595
        %599 = vmatprep.subr.bf16.mxu0 0
        %600 = vmatpush1.bf16.msra.mxu0 0
        %601 = vmatprep.subr.bf16.mxu0 0
        %602 = vmatpush1.bf16.msra.mxu0 0
        %603 = vmatprep.subr.bf16.mxu0 0
        %604 = vmatpush1.bf16.msra.mxu0 0
        %605 = vmatprep.subr.bf16.mxu0 0
        %606 = vmatpush1.bf16.msra.mxu0 0
        %607 = vmatprep.subr.bf16.mxu0 0
        %608 = vmatpush1.bf16.msra.mxu0 0
        %609 = vmatprep.subr.bf16.mxu0 0
        %610 = vmatpush1.bf16.msra.mxu0 0
        %611 = vmatprep.subr.bf16.mxu0 0
        %612 = vmatpush1.bf16.msra.mxu0 0
        %613 = vmatprep.subr.bf16.mxu0 0
        %614 = vmatpush1.bf16.msra.mxu0 0
        %615 = vmatprep.subr.bf16.mxu0 0
        %616 = vmatpush1.bf16.msra.mxu0 0
        %617 = vmatprep.subr.bf16.mxu0 0
        %618 = vmatpush1.bf16.msra.mxu0 0
        %619 = vmatprep.subr.bf16.mxu0 0
        %620 = vmatpush1.bf16.msra.mxu0 0
        %621 = vmatprep.subr.bf16.mxu0 0
        %622 = vmatpush1.bf16.msra.mxu0 0
        %623 = vmatprep.subr.bf16.mxu0 0
        %624 = vmatpush1.bf16.msra.mxu0 0
        %625 = vmatprep.subr.bf16.mxu0 0
        %626 = vmatpush1.bf16.msra.mxu0 0
        %627 = vmatprep.subr.bf16.mxu0 0
        %628 = vmatpush1.bf16.msra.mxu0 0
        %629 = vmatprep.mubr.bf16.mxu0 0
        %630 = vmatmul.mubr.bf16.gmra.mrb[0].mxu0 %v591
        %v631 = vpop.f32.mrb[0].mxu0
        %v632 = vadd.f32 %v588, %v631
        %v633 = vpop.f32.mrb[0].mxu0
        %v634 = vpop.f32.mrb[0].mxu0
        %v635 = vpop.f32.mrb[0].mxu0
        %636 = vdwg.mxu0
        %v637 = vpack.c.bf16 %v632, %v632
        %s638 = smul.addr %s579, 4
        %s639 = scalar_lea.vmem [#allocation3], %s638
        %640 = vst [vmem:[%s639] sm:$0xf] %v637
      $region56: #{app_forward.1} parent=43 // pred_fallthru
        _
      %p641 = scmp.eq.s32.totalorder %s573, 0
      %p642 = pnand %p561, %p641
      %p643 = pneg %p642
      // Predicated region
      $region57: #{app_forward.1} parent=43 // pred_check
        _
      $region58: #{app_forward.1} parent=43 // pred_check_branch
        %645 = sbr.rel (%p642) target = $region60
      $region59: #{app_forward.1} parent=43 // pred_region
        %s646 = sshra.s32 %s399, 3
        %s647 = sand.u32 %s399, 7
        %s648 = smul.addr %s646, 4
        %s649 = scalar_lea.vmem %s5, %s648
        %v650 = vld [vmem:[%s649] sm:$0xf]
        %v651 = vld [vmem:[#allocation3] sm:$0xf]
        %s652 = smul.addr %s646, 4
        %s653 = scalar_lea.vmem [#allocation4], %s652
        %v654 = vld [vmem:[%s653] sm:$0xf]
        %v655 = vunpack.c.l.bf16 %v654
        %vm656 = vcmask 64512
        %v658 = vsel %vm656, %v650, 0
        %vm660 = vcmask 1043456
        %v662 = vsel %vm660, %v651, 0
        %664 = vmatprep.subr.bf16.mxu0 0
        %665 = vmatpush1.bf16.msra.mxu0 %v662
        %666 = vmatprep.subr.bf16.mxu0 0
        %667 = vmatpush1.bf16.msra.mxu0 0
        %668 = vmatprep.subr.bf16.mxu0 0
        %669 = vmatpush1.bf16.msra.mxu0 0
        %670 = vmatprep.subr.bf16.mxu0 0
        %671 = vmatpush1.bf16.msra.mxu0 0
        %672 = vmatprep.subr.bf16.mxu0 0
        %673 = vmatpush1.bf16.msra.mxu0 0
        %674 = vmatprep.subr.bf16.mxu0 0
        %675 = vmatpush1.bf16.msra.mxu0 0
        %676 = vmatprep.subr.bf16.mxu0 0
        %677 = vmatpush1.bf16.msra.mxu0 0
        %678 = vmatprep.subr.bf16.mxu0 0
        %679 = vmatpush1.bf16.msra.mxu0 0
        %680 = vmatprep.subr.bf16.mxu0 0
        %681 = vmatpush1.bf16.msra.mxu0 0
        %682 = vmatprep.subr.bf16.mxu0 0
        %683 = vmatpush1.bf16.msra.mxu0 0
        %684 = vmatprep.subr.bf16.mxu0 0
        %685 = vmatpush1.bf16.msra.mxu0 0
        %686 = vmatprep.subr.bf16.mxu0 0
        %687 = vmatpush1.bf16.msra.mxu0 0
        %688 = vmatprep.subr.bf16.mxu0 0
        %689 = vmatpush1.bf16.msra.mxu0 0
        %690 = vmatprep.subr.bf16.mxu0 0
        %691 = vmatpush1.bf16.msra.mxu0 0
        %692 = vmatprep.subr.bf16.mxu0 0
        %693 = vmatpush1.bf16.msra.mxu0 0
        %694 = vmatprep.subr.bf16.mxu0 0
        %695 = vmatpush1.bf16.msra.mxu0 0
        %696 = vmatprep.mubr.bf16.mxu0 0
        %697 = vmatmul.mubr.bf16.gmra.mrb[0].mxu0 %v658
        %v698 = vpop.f32.mrb[0].mxu0
        %v699 = vadd.f32 %v655, %v698
        %v700 = vpop.f32.mrb[0].mxu0
        %v701 = vpop.f32.mrb[0].mxu0
        %v702 = vpop.f32.mrb[0].mxu0
        %703 = vdwg.mxu0
        %v704 = vpack.c.bf16 %v699, %v699
        %s705 = smul.addr %s646, 4
        %s706 = scalar_lea.vmem [#allocation2], %s705
        %707 = vst [vmem:[%s706] sm:$0xf] %v704
        %p708 = scmp.eq.s32.totalorder %s24, 10
        // Predicated region
        $region61: #{app_forward.1} parent=59 // pred_check
          %p709 = pneg %p708
        $region62: #{app_forward.1} parent=59 // pred_check_branch
          %711 = sbr.rel (%p709) target = $region64
        $region63: #{app_forward.1} parent=59 // pred_region
          %712 = vst [vmem:[%s385] sm:$0xff] %v699
          %v713 = vlaneseq
          %v714 = vand.u32 %v713, 127
          %vm715 = vcmp.lt.s32.totalorder %v714, 4
          %v716 = vsel %vm715, %v699, -1e+30
          %717 = vmax.xlane.f32.xlu0 %v716
          %v718 = vpop.xlane.xlu0 %717
          %v719 = vsub.f32 %v716, %v718
          %v720 = vmul.f32 %v719, 1.442695
          %v721 = vpow.pop %v720
          %v722 = vsel %vm715, %v721, 0.0
          %723 = vadd.xlane.f32.xlu0 %v722
          %v724 = vpop.xlane.xlu0 %723
          %v725 = vlog2.pop %v724
          %v726 = vmul.f32 %v725, 0.6931472
          %v727 = vsub.f32 %v719, %v726
          %728 = vst [vmem:[%s373] sm:$0xff] %v727
          %v729 = vlaneseq
          %v730 = vshrl.u32 %v729, 7
          %v731 = vstv %s399
          %v732 = vadd.s32 %v730, %v731
          %vm733 = vcmp.lt.s32.totalorder %v732, 8
          %v734 = vunpack.c.l.bf16 %v704
          %v735 = vsel %vm733, %v734, -1e+30
          %v736 = vrot.slane %v735, 4
          %v737 = vmax.f32 %v735, %v736
          %v738 = vrot.slane %v737, 2
          %v739 = vmax.f32 %v737, %v738
          %v740 = vrot.slane %v739, 1
          %v741 = vmax.f32 %v739, %v740
          %v742 = vld [vmem:[#allocation5] sm:$0x1]
          %v743 = vmax.f32 %v742, %v741
          %v745 = vlaneseq
          %v746 = vshrl.u32 %v745, 7
          %v747 = vsub.s32 0, %v746
          %v748 = vrot.slane %v743, %v747
          %v750 = vsub.f32 %v735, %v748
          %v751 = vmul.f32 %v750, 1.442695
          %v752 = vpow.pop %v751
          %v753 = vsel %vm733, %v752, 0.0
          %v754 = vld [vmem:[#allocation6] sm:$0x1]
          %v755 = vsub.f32 %v742, %v743
          %v756 = vmul.f32 %v755, 1.442695
          %v757 = vpow.pop %v756
          %v758 = vmul.f32 %v754, %v757
          %v759 = vrot.slane %v753, 4
          %v760 = vadd.f32 %v753, %v759
          %v761 = vrot.slane %v760, 2
          %v762 = vadd.f32 %v760, %v761
          %v763 = vrot.slane %v762, 1
          %v764 = vadd.f32 %v762, %v763
          %v765 = vadd.f32 %v758, %v764
          %766 = vst [vmem:[#allocation6] sm:$0x1] %v765
          %767 = vst [vmem:[#allocation5] sm:$0x1] %v743
        $region64: #{app_forward.1} parent=59 // pred_fallthru
          _
      $region60: #{app_forward.1} parent=43 // pred_fallthru
        _
      %p768 = scmp.eq.s32.totalorder %s24, 11
      // Predicated region
      $region65: #{app_forward.1} parent=43 // pred_check
        %p769 = pneg %p768
      $region66: #{app_forward.1} parent=43 // pred_check_branch
        %771 = sbr.rel (%p769) target = $region68
      $region67: #{app_forward.1} parent=43 // pred_region
        %s772 = sshra.s32 %s399, 3
        %s773 = sand.u32 %s399, 7
        %s774 = smul.addr %s772, 4
        %s775 = scalar_lea.vmem [#allocation2], %s774
        %v776 = vld [vmem:[%s775] sm:$0xf]
        %v777 = vunpack.c.l.bf16 %v776
        %v778 = vlaneseq
        %v779 = vshrl.u32 %v778, 7
        %v780 = vstv %s399
        %v781 = vadd.s32 %v779, %v780
        %vm782 = vcmp.lt.s32.totalorder %v781, 8
        %v783 = vld [vmem:[#allocation5] sm:$0x1]
        %v785 = vlaneseq
        %v786 = vshrl.u32 %v785, 7
        %v787 = vsub.s32 0, %v786
        %v788 = vrot.slane %v783, %v787
        %v790 = vsub.f32 %v777, %v788
        %v791 = vmul.f32 %v790, 1.442695
        %v792 = vpow.pop %v791
        %v793 = vsel %vm782, %v792, 0.0
        %v794 = vld [vmem:[#allocation6] sm:$0x1]
        %v795 = vrcp.pop %v794
        %v797 = vlaneseq
        %v798 = vshrl.u32 %v797, 7
        %v799 = vsub.s32 0, %v798
        %v800 = vrot.slane %v795, %v799
        %v802 = vmul.f32 %v793, %v800
        %803 = vst [vmem:[%s395] sm:$0xff] %v802
      $region68: #{app_forward.1} parent=43 // pred_fallthru
        _
      %p804 = scmp.lt.s32.totalorder %s24, 10
      %p805 = scmp.eq.s32.totalorder %s24, 10
      %s806 = scalar_select %p805, %s25, 0
      %s807 = scalar_select %p804, 0, %s806
      %p808 = scmp.lt.s32.totalorder %s807, 0
      %s809 = scalar_select %p808, %s807, 0
      %s810 = smul.addr %s809, 8
      %s811 = scalar_lea.vmem %s6, %s810
      %p812 = scmp.lt.s32.totalorder %s24, 10
      %p813 = scmp.eq.s32.totalorder %s24, 10
      %s814 = scalar_select %p813, %s25, 0
      %s815 = scalar_select %p812, 0, %s814
      %p816 = scmp.lt.s32.totalorder %s815, 0
      %s817 = scalar_select %p816, %s815, 0
      %s818 = smul.addr %s817, 8
      %s819 = scalar_lea.vmem %s7, %s818
      %p820 = scmp.le.s32.totalorder %s24, 10
      %s821 = scalar_select %p820, 0, %s25
      %p822 = scmp.lt.s32.totalorder %s821, 0
      %s823 = scalar_select %p822, %s821, 0
      %s824 = smul.addr %s823, 8
      %s825 = scalar_lea.vmem %s8, %s824
      // Predicated region
      $region69: #{app_forward.1} parent=43 // pred_check
        %p826 = pneg %p193
      $region70: #{app_forward.1} parent=43 // pred_check_branch
        %828 = sbr.rel (%p826) target = $region72
      $region71: #{app_forward.1} parent=43 // pred_region
        %p829 = scmp.lt.s32.totalorder %s24, 10
        %p830 = scmp.eq.s32.totalorder %s24, 10
        %s831 = scalar_select %p830, %s25, 0
        %s832 = scalar_select %p829, 0, %s831
      $region72: #{app_forward.1} parent=43 // pred_fallthru
        _
      // Predicated region
      $region73: #{app_forward.1} parent=43 // pred_check
        %p833 = pneg %p227
      $region74: #{app_forward.1} parent=43 // pred_check_branch
        %835 = sbr.rel (%p833) target = $region76
      $region75: #{app_forward.1} parent=43 // pred_region
        %p836 = scmp.lt.s32.totalorder %s24, 10
        %p837 = scmp.eq.s32.totalorder %s24, 10
        %s838 = scalar_select %p837, %s25, 0
        %s839 = scalar_select %p836, 0, %s838
      $region76: #{app_forward.1} parent=43 // pred_fallthru
        _
      // Predicated region
      $region77: #{app_forward.1} parent=43 // pred_check
        %p840 = pneg %p257
      $region78: #{app_forward.1} parent=43 // pred_check_branch
        %842 = sbr.rel (%p840) target = $region80
      $region79: #{app_forward.1} parent=43 // pred_region
        %p843 = scmp.le.s32.totalorder %s24, 10
        %s844 = scalar_select %p843, 0, %s25
      $region80: #{app_forward.1} parent=43 // pred_fallthru
        _
    $region44: #{app_forward.1} parent=5 // pred_fallthru
      _
    %p845 = scmp.le.s32.totalorder 2, %s15
    // Predicated region
    $region81: #{app_forward.1} parent=5 // pred_check
      %p846 = pneg %p845
    $region82: #{app_forward.1} parent=5 // pred_check_branch
      %848 = sbr.rel (%p846) target = $region84
    $region83: #{app_forward.1} parent=5 // pred_region
      %s849 = ssub.s32 %s15, 2
      // Predicated region
      $region85: #{app_forward.1} parent=83 // pred_check
        %p850 = pneg %p199
      $region86: #{app_forward.1} parent=83 // pred_check_branch
        %852 = sbr.rel (%p850) target = $region88
      $region87: #{app_forward.1} parent=83 // pred_region
        %p853 = scmp.lt.s32.totalorder %s26, 10
        %p854 = scmp.eq.s32.totalorder %s26, 10
        %s855 = scalar_select %p854, %s27, 0
        %s856 = scalar_select %p853, 0, %s855
        %p857 = scmp.lt.s32.totalorder %s856, 0
        %s858 = scalar_select %p857, %s856, 0
        %s859 = smul.addr %s858, 8
        %s860 = scalar_lea.vmem %s6, %s859
      $region88: #{app_forward.1} parent=83 // pred_fallthru
        _
      // Predicated region
      $region89: #{app_forward.1} parent=83 // pred_check
        %p861 = pneg %p233
      $region90: #{app_forward.1} parent=83 // pred_check_branch
        %863 = sbr.rel (%p861) target = $region92
      $region91: #{app_forward.1} parent=83 // pred_region
        %p864 = scmp.lt.s32.totalorder %s26, 10
        %p865 = scmp.eq.s32.totalorder %s26, 10
        %s866 = scalar_select %p865, %s27, 0
        %s867 = scalar_select %p864, 0, %s866
        %p868 = scmp.lt.s32.totalorder %s867, 0
        %s869 = scalar_select %p868, %s867, 0
        %s870 = smul.addr %s869, 8
        %s871 = scalar_lea.vmem %s7, %s870
      $region92: #{app_forward.1} parent=83 // pred_fallthru
        _
      // Predicated region
      $region93: #{app_forward.1} parent=83 // pred_check
        %p872 = pneg %p263
      $region94: #{app_forward.1} parent=83 // pred_check_branch
        %874 = sbr.rel (%p872) target = $region96
      $region95: #{app_forward.1} parent=83 // pred_region
        %p875 = scmp.le.s32.totalorder %s26, 10
        %s876 = scalar_select %p875, 0, %s27
        %p877 = scmp.lt.s32.totalorder %s876, 0
        %s878 = scalar_select %p877, %s876, 0
        %s879 = smul.addr %s878, 8
        %s880 = scalar_lea.vmem %s8, %s879
      $region96: #{app_forward.1} parent=83 // pred_fallthru
        _
    $region84: #{app_forward.1} parent=5 // pred_fallthru
      _
  $region6: #{app_forward.1} parent=0 // loop_footer
    %s19 = sadd.s32 1, %s15
  $region7: #{app_forward.1} parent=0 // loop_footer_branch
    %14 = sbr.rel target = $region3
  $region8: #{app_forward.1} parent=0 // loop_exit
    _

</llo_original>
